<compile_context>
chip_gen: v5e
topology: v5e:2x2
jax: 0.10.0
libtpu: 0.0.40
codegen_flags: <defaults>
</compile_context>

<pallas_src>
import functools

import jax
import jax.numpy as jnp
from jax.experimental import pallas as pl
from jax.experimental.pallas import tpu as pltpu


def _rmsnorm_kernel(x_ref, w_ref, o_ref, *, eps, inv_hidden, fast_math):
    # x_ref: (block_rows, hidden), w_ref: (1, hidden) f32, o_ref: (block_rows, hidden)
    x_f32 = x_ref[...].astype(jnp.float32)
    # sum * (1/hidden) (constant) instead of mean.
    variance = jnp.sum(x_f32 * x_f32, axis=-1, keepdims=True) * inv_hidden
    inv_rms = jax.lax.rsqrt(variance + eps)
    w_f32 = w_ref[...]  # already f32 (upcast in the wrapper)
    if fast_math:
        # Skip the intermediate cast back to the input dtype (slightly different
        # numerics vs torch; kept behind a flag).
        o_ref[...] = (x_f32 * inv_rms * w_f32).astype(o_ref.dtype)
    else:
        # Strict torch order: normalize in f32, cast to input dtype, then scale
        # by the f32 weight.
        normed = (x_f32 * inv_rms).astype(x_ref.dtype)
        o_ref[...] = (w_f32 * normed.astype(jnp.float32)).astype(o_ref.dtype)


def _sublane_align(dtype) -> int:
    # Rows per fully-packed vreg sublane group: f32 -> 8, bf16 -> 16, 8-bit -> 32.
    itemsize = jnp.dtype(dtype).itemsize
    return max(8, 32 // max(itemsize, 1))


def _round_up(x: int, m: int) -> int:
    return ((x + m - 1) // m) * m


def _cdiv(a: int, b: int) -> int:
    return -(-a // b)


def mixtral_rmsnorm(hidden_states: jax.Array,
                    weight: jax.Array,
                    eps: float = 1e-6,
                    block_rows: int | None = None,
                    out_dtype=None,
                    fast_math: bool = False,
                    vmem_budget_bytes: int = 32 * 1024 * 1024) -> jax.Array:
    """RMSNorm over the last axis of `hidden_states`, scaled by `weight`.

    out_dtype=None -> output in hidden_states.dtype (common bf16-in/bf16-out path).
    Pass out_dtype=jnp.result_type(hidden_states.dtype, weight.dtype) for strict
    PyTorch type-promotion parity (f32 output when weight is f32).
    """
    orig_shape = hidden_states.shape
    hidden = orig_shape[-1]
    x2d = hidden_states.reshape(-1, hidden)
    rows = x2d.shape[0]

    if out_dtype is None:
        out_dtype = hidden_states.dtype

    in_bytes = jnp.dtype(x2d.dtype).itemsize
    out_bytes = jnp.dtype(out_dtype).itemsize
    align = max(_sublane_align(x2d.dtype), _sublane_align(out_dtype))

    # Per-row VMEM cost: double-buffered in+out tiles PLUS the live f32
    # intermediates materialized inside the body (x_f32 / normed, ~2 * 4 bytes/elem).
    bytes_per_row = hidden * (2 * (in_bytes + out_bytes) + 2 * 4)

    if block_rows is None:
        budget_rows = (vmem_budget_bytes // bytes_per_row) // align * align
        budget_rows = max(align, min(budget_rows, 2048))
        # Keep the grid at ~8 steps for large inputs (pipeline overlap; shards the
        # row axis across both v7x TensorCores), but don't shrink tiles below
        # ~256 rows (per-step overhead / lane-dense store efficiency).
        target_blocks = 8
        rows_per_block_for_target = _round_up(max(_cdiv(rows, target_blocks), 1), align)
        min_tile_rows = _round_up(min(256, rows), align)
        block_rows = min(budget_rows, max(min_tile_rows, rows_per_block_for_target))
    else:
        block_rows = _round_up(max(block_rows, 1), align)
    # Never allocate tiles larger than the (alignment-rounded) row count.
    block_rows = min(block_rows, _round_up(rows, align))

    grid = (_cdiv(rows, block_rows),)

    # Scoped VMEM: I/O tiles (double-buffered) + f32 intermediates + f32 weight,
    # plus a little headroom; clamped to 56 MiB so it stays under v7x's 64 MiB
    # physical VMEM (v5e/v6e have 128 MiB, so the clamp is harmless there).
    footprint = (2 * block_rows * hidden * (in_bytes + out_bytes)
                 + 2 * block_rows * hidden * 4
                 + 2 * hidden * 4)
    vmem_limit = int(min(max(footprint + 4 * 1024 * 1024, 16 * 1024 * 1024),
                         56 * 1024 * 1024))

    # Pre-upcast the weight once on the host side; the constant (0,0) index_map
    # keeps it resident in VMEM across all grid steps.
    w2d = weight.reshape(1, hidden).astype(jnp.float32)

    out = pl.pallas_call(
        functools.partial(_rmsnorm_kernel, eps=eps, inv_hidden=1.0 / hidden,
                          fast_math=fast_math),
        out_shape=jax.ShapeDtypeStruct((rows, hidden), out_dtype),
        grid_spec=pltpu.PrefetchScalarGridSpec(
            num_scalar_prefetch=0,
            grid=grid,
            in_specs=[
                pl.BlockSpec((block_rows, hidden), lambda i: (i, 0)),
                pl.BlockSpec((1, hidden), lambda i: (0, 0)),
            ],
            out_specs=pl.BlockSpec((block_rows, hidden), lambda i: (i, 0)),
        ),
        compiler_params=pltpu.CompilerParams(
            dimension_semantics=("parallel",),
            vmem_limit_bytes=vmem_limit),
    )(x2d, w2d)

    return out.reshape(orig_shape[:-1] + (hidden,))


def _reference_rmsnorm(hidden_states, weight, eps=1e-6, out_dtype=None):
    input_dtype = hidden_states.dtype
    if out_dtype is None:
        out_dtype = input_dtype
    h = hidden_states.astype(jnp.float32)
    variance = jnp.mean(h * h, axis=-1, keepdims=True)
    h = h * jax.lax.rsqrt(variance + eps)
    return (weight.astype(jnp.float32)
            * h.astype(input_dtype).astype(jnp.float32)).astype(out_dtype)


if __name__ == "__main__":
    key = jax.random.PRNGKey(0)
    k1, k2, k3 = jax.random.split(key, 3)

    # Test 1: f32, rows divide evenly into the tile.
    batch, seq, hidden = 2, 8, 256
    x = jax.random.normal(k1, (batch, seq, hidden), dtype=jnp.float32)
    weight = jnp.ones((hidden,), dtype=jnp.float32)  # matches nn.Parameter(torch.ones(...))
    out = jax.block_until_ready(mixtral_rmsnorm(x, weight, eps=1e-6))
    ref = _reference_rmsnorm(x, weight, eps=1e-6)
    assert out.shape == ref.shape and out.dtype == ref.dtype
    assert jnp.allclose(out, ref, atol=1e-5, rtol=1e-5)

    # Test 2: bf16 activations with a ragged (only) block — no host-side padding.
    batch2, seq2 = 2, 5  # rows = 10, not a multiple of the bf16 row alignment (16)
    xb = jax.random.normal(k2, (batch2, seq2, hidden), dtype=jnp.bfloat16)
    wb = (1.0 + 0.1 * jax.random.normal(k3, (hidden,))).astype(jnp.float32)
    outb = jax.block_until_ready(mixtral_rmsnorm(xb, wb, eps=1e-6))
    refb = _reference_rmsnorm(xb, wb, eps=1e-6)
    assert outb.shape == refb.shape and outb.dtype == jnp.bfloat16
    assert jnp.allclose(outb.astype(jnp.float32), refb.astype(jnp.float32),
                        atol=1e-2, rtol=1e-2)

    # Test 3: fast-math path (skips the bf16 re-quantization round trip).
    outf = jax.block_until_ready(mixtral_rmsnorm(xb, wb, eps=1e-6, fast_math=True))
    assert jnp.allclose(outf.astype(jnp.float32), refb.astype(jnp.float32),
                        atol=2e-2, rtol=2e-2)

    # Test 4: multi-block grid with a forced small tile (exercises the pipeline path).
    rows4, hidden4 = 64, 256
    x4 = jax.random.normal(k1, (rows4, hidden4), dtype=jnp.float32)
    w4 = (1.0 + 0.05 * jax.random.normal(k2, (hidden4,))).astype(jnp.float32)
    out4 = jax.block_until_ready(mixtral_rmsnorm(x4, w4, eps=1e-6, block_rows=16))
    ref4 = _reference_rmsnorm(x4, w4, eps=1e-6)
    assert jnp.allclose(out4, ref4, atol=1e-5, rtol=1e-5)

    print("KERNEL_OK")
</pallas_src>

<mosaic_0001>
module attributes {stable_mosaic.version = 11 : i64} {
  func.func @_rmsnorm_kernel(%arg0: i32, %arg1: memref<16x256xf32, #tpu.memory_space<vmem>>, %arg2: memref<1x256xf32, #tpu.memory_space<vmem>>, %arg3: memref<16x256xf32, #tpu.memory_space<vmem>>) attributes {dimension_semantics = [#tpu.dimension_semantics<parallel>], iteration_bounds = array<i64: 1>, scalar_prefetch = 0 : i64, scratch_operands = 0 : i64, tpu.core_type = #tpu.core_type<tc>, window_params = [{transform_indices = @transform_0, window_bounds = array<i64: 16, 256>}, {pipeline_mode = #tpu.pipeline_mode<synchronous>, transform_indices = @transform_1, window_bounds = array<i64: 1, 256>}, {transform_indices = @transform_2, window_bounds = array<i64: 16, 256>}]} {
    %c0 = arith.constant 0 : index
    %c0_0 = arith.constant 0 : index
    %0 = vector.load %arg1[%c0, %c0_0] : memref<16x256xf32, #tpu.memory_space<vmem>>, vector<16x256xf32>
    %1 = arith.mulf %0, %0 : vector<16x256xf32>
    %cst = arith.constant dense<0.000000e+00> : vector<16xf32>
    %2 = vector.multi_reduction <add>, %1, %cst [1] : vector<16x256xf32> to vector<16xf32>
    %3 = vector.shape_cast %2 : vector<16xf32> to vector<16x1xf32>
    %cst_1 = arith.constant 3.906250e-03 : f32
    %4 = vector.broadcast %cst_1 : f32 to vector<16x1xf32>
    %5 = arith.mulf %3, %4 : vector<16x1xf32>
    %cst_2 = arith.constant 9.99999997E-7 : f32
    %6 = vector.broadcast %cst_2 : f32 to vector<16x1xf32>
    %7 = arith.addf %5, %6 : vector<16x1xf32>
    %8 = math.rsqrt %7 : vector<16x1xf32>
    %c0_3 = arith.constant 0 : index
    %c0_4 = arith.constant 0 : index
    %9 = vector.load %arg2[%c0_3, %c0_4] : memref<1x256xf32, #tpu.memory_space<vmem>>, vector<1x256xf32>
    %10 = vector.broadcast %8 : vector<16x1xf32> to vector<16x256xf32>
    %11 = arith.mulf %0, %10 : vector<16x256xf32>
    %12 = vector.broadcast %9 : vector<1x256xf32> to vector<16x256xf32>
    %13 = arith.mulf %12, %11 : vector<16x256xf32>
    %c0_5 = arith.constant 0 : index
    %c0_6 = arith.constant 0 : index
    %14 = vector.load %arg3[%c0_5, %c0_6] : memref<16x256xf32, #tpu.memory_space<vmem>>, vector<16x256xf32>
    tpu.vector_store %arg3[%c0_5, %c0_6], %13 {strides = array<i32>} : memref<16x256xf32, #tpu.memory_space<vmem>>, vector<16x256xf32>,
    return
  }
  func.func @transform_0(%arg0: i32) -> (i32, i32) {
    %c0_i32 = arith.constant 0 : i32
    %c0_i32_0 = arith.constant 0 : i32
    return %arg0, %c0_i32 : i32, i32
  }
  func.func @transform_1(%arg0: i32) -> (i32, i32) {
    %c0_i32 = arith.constant 0 : i32
    %c0_i32_0 = arith.constant 0 : i32
    %c0_i32_1 = arith.constant 0 : i32
    return %c0_i32, %c0_i32_0 : i32, i32
  }
  func.func @transform_2(%arg0: i32) -> (i32, i32) {
    %c0_i32 = arith.constant 0 : i32
    %c0_i32_0 = arith.constant 0 : i32
    return %arg0, %c0_i32 : i32, i32
  }
}

</mosaic_0001>

<llo_original>
// kernel: tpu_custom_call.1
$region0: #{tpu_custom_call.1}
  #allocation0 [shape = 'u32[]', space=smem, size = 0x4, offset = 0x4, fixed_abs, tag = 'smem constant byte address 0x4 - core index']
  #allocation1 [shape = 'u32[72,128]{1,0:T(1,128)}', space=vmem, size = 0x9000, scoped, tag = 'internal scratch']
  %s0 = inlined_call_operand.hbm [shape: f32[16,256], index: 0, kind: input, shape index: {}]
  %s1 = inlined_call_operand.hbm [shape: f32[1,256], index: 1, kind: input, shape index: {}]
  %s2 = inlined_call_operand.hbm [shape: f32[16,256], index: 2, kind: output, shape index: {}]
  %s3 = sld [smem:[#allocation0]]
  $region26: #{tpu_custom_call.1} parent=0
    _
  %s5 = ssub.s32 1, %s3
  %s6 = scalar_select 0, %s5, %s3
  $region1: #{tpu_custom_call.1} parent=0
    #allocation2 [shape = 'u8[16384]{0}', space=vmem, size = 0x4000, scoped, tag = 'input window, operand 0, single buffered']
    #allocation3 [shape = 's32[1]{0}', space=sflag, size = 0x4, scoped, tag = 'scoped memory for tpu_custom_call.1']
    #allocation4 [shape = 's32[1]{0}', space=sflag, size = 0x4, scoped, tag = 'scoped memory for tpu_custom_call.1']
    #allocation5 [shape = 'u8[1024]{0}', space=vmem, size = 0x400, scoped, tag = 'input window, operand 1, single buffered']
    #allocation6 [shape = 's32[1]{0}', space=sflag, size = 0x4, scoped, tag = 'scoped memory for tpu_custom_call.1']
    #allocation7 [shape = 'u8[16384]{0}', space=vmem, size = 0x4000, scoped, tag = 'output window, operand 0, single buffered']
    %7 = vsyncpa [#allocation3], 0
    %8 = vsyncpa [#allocation6], 0
    %9 = vsyncpa [#allocation4], 0
    // Predicated region
    $region2: #{tpu_custom_call.1} parent=1 // pred_check
      _
    $region3: #{tpu_custom_call.1} parent=1 // pred_check_branch
      %11 = sbr.rel (0) target = $region5
    $region4: #{tpu_custom_call.1} parent=1 // pred_region
      %13 = vsyncadd [#allocation3], 0
      %s14 = sshll.u32 %s0, 4
      %s15 = int_to_ptr.hbm [resolvable:$true] %s14
      %s16 = sshll.u32 [#allocation2], 4
      %s17 = int_to_ptr.vmem [resolvable:$true] %s16
      %22 = dma.hbm_to_vmem [thread:$0]  %s15, 512, %s17, [#allocation3], 256, 256, 16
    $region5: #{tpu_custom_call.1} parent=1 // pred_fallthru
      _
    // Predicated region
    $region6: #{tpu_custom_call.1} parent=1 // pred_check
      _
    $region7: #{tpu_custom_call.1} parent=1 // pred_check_branch
      %24 = sbr.rel (0) target = $region9
    $region8: #{tpu_custom_call.1} parent=1 // pred_region
      %26 = vsyncadd [#allocation6], 0
      %s28 = sshll.u32 %s1, 4
      %s29 = int_to_ptr.hbm [resolvable:$true] %s28
      %s30 = sshll.u32 [#allocation5], 4
      %s31 = int_to_ptr.vmem [resolvable:$true] %s30
      %33 = dma.hbm_to_vmem [thread:$0]  %s29, 32, %s31, [#allocation6]
    $region9: #{tpu_custom_call.1} parent=1 // pred_fallthru
      _
    // Predicated region
    $region10: #{tpu_custom_call.1} parent=1 // pred_check
      _
    $region11: #{tpu_custom_call.1} parent=1 // pred_check_branch
      %35 = sbr.rel (0) target = $region13
    $region12: #{tpu_custom_call.1} parent=1 // pred_region
      %37 = dma.done [#allocation3], 512
    $region13: #{tpu_custom_call.1} parent=1 // pred_fallthru
      _
    // Predicated region
    $region14: #{tpu_custom_call.1} parent=1 // pred_check
      _
    $region15: #{tpu_custom_call.1} parent=1 // pred_check_branch
      %39 = sbr.rel (0) target = $region17
    $region16: #{tpu_custom_call.1} parent=1 // pred_region
      %41 = dma.done [#allocation6], 32
    $region17: #{tpu_custom_call.1} parent=1 // pred_fallthru
      _
    %v42 = vld [vmem:[#allocation2] sm:$0xff]
    %v43 = vld [vmem:[#allocation2 + $0x8] sm:$0xff]
    %v44 = vld [vmem:[#allocation2 + $0x10] sm:$0xff]
    %v45 = vld [vmem:[#allocation2 + $0x18] sm:$0xff]
    %v46 = vmul.f32 %v42, %v42
    %v47 = vmul.f32 %v43, %v43
    %v48 = vmul.f32 %v44, %v44
    %v49 = vmul.f32 %v45, %v45
    %v50 = vadd.f32 %v46, %v47
    %51 = vadd.xlane.f32.xlu0 %v50
    %v52 = vpop.xlane.xlu0 %51
    %v53 = vadd.f32 %v48, %v49
    %54 = vadd.xlane.f32.xlu0 %v53
    %v55 = vpop.xlane.xlu0 %54
    %v56 = vmul.f32 %v52, 0.00390625
    %v57 = vmul.f32 %v55, 0.00390625
    %v58 = vadd.f32 %v56, 1e-06
    %v59 = vadd.f32 %v57, 1e-06
    %v60 = vrsqrt.pop %v58
    %v61 = vmul.f32 %v60, %v58
    %v62 = vmul.f32 %v61, %v60
    %v63 = vmul.f32 0.5, %v62
    %v64 = vsub.f32 1.5, %v63
    %v65 = vmul.f32 %v60, %v64
    %vm66 = vweird.f32 %v58
    %vm67 = vweird.f32 %v60
    %vm68 = vmor %vm66, %vm67
    %v69 = vsel %vm68, %v60, %v65
    %v70 = vrsqrt.pop %v59
    %v71 = vmul.f32 %v70, %v59
    %v72 = vmul.f32 %v71, %v70
    %v73 = vmul.f32 0.5, %v72
    %v74 = vsub.f32 1.5, %v73
    %v75 = vmul.f32 %v70, %v74
    %vm76 = vweird.f32 %v59
    %vm77 = vweird.f32 %v70
    %vm78 = vmor %vm76, %vm77
    %v79 = vsel %vm78, %v70, %v75
    %v80 = vld [vmem:[#allocation5] sm:$0x3]
    %v81 = vmul.f32 %v42, %v69
    %v82 = vmul.f32 %v43, %v69
    %v83 = vmul.f32 %v44, %v79
    %v84 = vmul.f32 %v45, %v79
    %v86 = vperm.slane %v80, 0
    %v87 = vperm.slane %v80, 1
    %v90 = vmul.f32 %v86, %v81
    %v91 = vmul.f32 %v87, %v82
    %v92 = vmul.f32 %v86, %v83
    %v93 = vmul.f32 %v87, %v84
    %94 = vst [vmem:[#allocation7] sm:$0xff] %v90
    %95 = vst [vmem:[#allocation7 + $0x8] sm:$0xff] %v91
    %96 = vst [vmem:[#allocation7 + $0x10] sm:$0xff] %v92
    %97 = vst [vmem:[#allocation7 + $0x18] sm:$0xff] %v93
    // Predicated region
    $region18: #{tpu_custom_call.1} parent=1 // pred_check
      _
    $region19: #{tpu_custom_call.1} parent=1 // pred_check_branch
      %99 = sbr.rel (0) target = $region21
    $region20: #{tpu_custom_call.1} parent=1 // pred_region
      %101 = vsyncadd [#allocation4], 0
      %s102 = sshll.u32 [#allocation7], 4
      %s103 = int_to_ptr.vmem [resolvable:$true] %s102
      %s104 = sshll.u32 %s2, 4
      %s105 = int_to_ptr.hbm [resolvable:$true] %s104
      %110 = dma.vmem_to_hbm [thread:$0]  %s103, 512, %s105, [#allocation4], 256, 256, 16
    $region21: #{tpu_custom_call.1} parent=1 // pred_fallthru
      _
    // Predicated region
    $region22: #{tpu_custom_call.1} parent=1 // pred_check
      _
    $region23: #{tpu_custom_call.1} parent=1 // pred_check_branch
      %112 = sbr.rel (0) target = $region25
    $region24: #{tpu_custom_call.1} parent=1 // pred_region
      %114 = dma.done [#allocation4], 512
    $region25: #{tpu_custom_call.1} parent=1 // pred_fallthru
      _
    %115 = vsyncpa [#allocation3], 1
    %116 = vsyncpa [#allocation6], 1
    %117 = vsyncpa [#allocation4], 1

</llo_original>
